<compile_context>
chip_gen: v7x
topology: tpu7x:2x2x1
jax: 0.10.0
libtpu: 0.0.40
codegen_flags: <defaults>
</compile_context>

<pallas_src>
import jax
import jax.numpy as jnp
from jax import lax
from jax.experimental import pallas as pl
from jax.experimental.pallas import tpu as pltpu

# ---- model dims (small, synthetic, lane-dense) ----
B = 2          # batch
S = 8          # sequence length
H = 128        # hidden size (full 128-lane vregs, full MXU K on v5e)
V = 128        # vocab size (lane-dense logits)
VOCAB = V

_GELU_C0 = 0.7978845608028654   # sqrt(2/pi)
_GELU_C1 = 0.044715
_LN_EPS = 1e-5


def _ln_gelu_head(x, w1_ref, b1_ref, w2_ref, b2_ref, out_ref):
    """Shared core: LayerNorm -> Dense+GELU -> LM head. x is [M, H] f32."""
    # LayerNorm over hidden dim (f32 VPU math — correct on all generations).
    mu = jnp.mean(x, axis=-1, keepdims=True)
    xc = x - mu
    var = jnp.mean(xc * xc, axis=-1, keepdims=True)
    xn = xc * lax.rsqrt(var + _LN_EPS)

    # Dense H -> H: bf16 operands to the MXU, f32 accumulation.
    h = jnp.dot(xn.astype(jnp.bfloat16), w1_ref[...],
                preferred_element_type=jnp.float32) + b1_ref[...]
    # tanh-GELU: h^3 via h2*h (fewer VALU muls), tanh on the EUP.
    h2 = h * h
    h = 0.5 * h * (1.0 + jnp.tanh(_GELU_C0 * (h + _GELU_C1 * h2 * h)))

    # LM head H -> V: bf16 operands, f32 accumulation.
    logits = jnp.dot(h.astype(jnp.bfloat16), w2_ref[...],
                     preferred_element_type=jnp.float32) + b2_ref[...]
    out_ref[...] = logits.astype(out_ref.dtype)


def _lm_ids_kernel(ids_ref,                       # SMEM, (M,) int32 (prefetched)
                   wte_ref, wpe_ref, w1_ref, b1_ref, w2_ref, b2_ref,
                   out_ref, x_scratch):
    """input_ids path: SMEM-indexed row gather from the VMEM-resident wte."""
    m = x_scratch.shape[0]
    s = wpe_ref.shape[0]
    vocab = wte_ref.shape[0]
    # Unrolled gather: 16 single-row dynamic slices + static positional add.
    for i in range(m):
        tok = jnp.clip(ids_ref[i], 0, vocab - 1)          # OOB ids -> clamp
        x_scratch[pl.ds(i, 1), :] = (
            wte_ref[pl.ds(tok, 1), :] + wpe_ref[pl.ds(i % s, 1), :])
    _ln_gelu_head(x_scratch[...], w1_ref, b1_ref, w2_ref, b2_ref, out_ref)


def _lm_embeds_kernel(x_ref, wpe_ref, w1_ref, b1_ref, w2_ref, b2_ref, out_ref):
    """inputs_embeds path: embeddings passed straight through + in-kernel pos add."""
    reps = x_ref.shape[0] // wpe_ref.shape[0]             # batch broadcast
    pos = jnp.tile(wpe_ref[...], (reps, 1))               # (M, H) sublane copy
    x = x_ref[...].astype(jnp.float32) + pos
    _ln_gelu_head(x, w1_ref, b1_ref, w2_ref, b2_ref, out_ref)


def _const_spec(shape):
    zeros = (0,) * len(shape)
    # index_map may also receive the scalar-prefetch ref(s) positionally.
    return pl.BlockSpec(shape, lambda *_: zeros)


def _pallas_ids(ids_flat, wte, wpe, w1, b1, w2, b2):
    m = ids_flat.shape[0]
    vocab, h = wte.shape
    s = wpe.shape[0]
    v = w2.shape[1]
    return pl.pallas_call(
        _lm_ids_kernel,
        out_shape=jax.ShapeDtypeStruct((m, v), jnp.float32),
        grid_spec=pltpu.PrefetchScalarGridSpec(
            num_scalar_prefetch=1,           # ids -> SMEM before the grid runs
            grid=(1,),                       # single block: no per-step overhead
            in_specs=[
                _const_spec((vocab, h)),     # wte (f32, VMEM-resident)
                _const_spec((s, h)),         # wpe (f32)
                _const_spec((h, h)),         # w1 (bf16, resident)
                _const_spec((1, h)),         # b1
                _const_spec((h, v)),         # w2 (bf16, resident)
                _const_spec((1, v)),         # b2
            ],
            out_specs=_const_spec((m, v)),
            scratch_shapes=[pltpu.VMEM((m, h), jnp.float32)],
        ),
        compiler_params=pltpu.CompilerParams(
            dimension_semantics=("arbitrary",)),
    )(ids_flat, wte, wpe, w1, b1, w2, b2)


def _pallas_embeds(embeds_flat, wpe, w1, b1, w2, b2):
    m, h = embeds_flat.shape
    s = wpe.shape[0]
    v = w2.shape[1]
    return pl.pallas_call(
        _lm_embeds_kernel,
        out_shape=jax.ShapeDtypeStruct((m, v), jnp.float32),
        grid_spec=pltpu.PrefetchScalarGridSpec(
            num_scalar_prefetch=0,
            grid=(1,),
            in_specs=[
                _const_spec((m, h)),         # inputs_embeds
                _const_spec((s, h)),         # wpe
                _const_spec((h, h)),         # w1
                _const_spec((1, h)),         # b1
                _const_spec((h, v)),         # w2
                _const_spec((1, v)),         # b2
            ],
            out_specs=_const_spec((m, v)),
        ),
        compiler_params=pltpu.CompilerParams(
            dimension_semantics=("arbitrary",)),
    )(embeds_flat, wpe, w1, b1, w2, b2)


@jax.jit
def _forward_ids(input_ids, wte, wpe, w1, b1, w2, b2):
    b, s = input_ids.shape
    ids_flat = input_ids.reshape(b * s).astype(jnp.int32)
    logits = _pallas_ids(ids_flat, wte, wpe[:s], w1, b1, w2, b2)
    return logits.reshape(b, s, logits.shape[-1])


@jax.jit
def _forward_embeds(inputs_embeds, wpe, w1, b1, w2, b2):
    b, s, h = inputs_embeds.shape
    logits = _pallas_embeds(inputs_embeds.reshape(b * s, h).astype(jnp.float32),
                            wpe[:s], w1, b1, w2, b2)
    return logits.reshape(b, s, logits.shape[-1])


def make_params():
    """Deterministic synthetic parameters (MXU weights stored bf16, wte f32)."""
    keys = jax.random.split(jax.random.PRNGKey(0), 4)
    wte = jax.random.normal(keys[0], (VOCAB, H), jnp.float32) * 0.02
    wpe = jax.random.normal(keys[1], (S, H), jnp.float32) * 0.02
    w1 = (jax.random.normal(keys[2], (H, H), jnp.float32)
          * (float(H) ** -0.5)).astype(jnp.bfloat16)
    b1 = jnp.zeros((1, H), jnp.float32)
    w2 = (jax.random.normal(keys[3], (H, V), jnp.float32)
          * (float(H) ** -0.5)).astype(jnp.bfloat16)
    b2 = jnp.zeros((1, V), jnp.float32)
    return dict(wte=wte, wpe=wpe, w1=w1, b1=b1, w2=w2, b2=b2)


def hugging_face_container_forward(params, *args, **kwargs):
    """JAX/Pallas equivalent of HuggingFaceContainer.forward.

    Accepts `inputs=`, `input_ids=` keyword, or a positional tensor.
    Integer inputs -> input_ids path (in-kernel SMEM-indexed embedding gather).
    Float inputs   -> inputs_embeds path (used directly as embeddings).
    Returns logits [B, S, V].
    """
    if "inputs" in kwargs:
        kwargs["input_ids"] = kwargs.pop("inputs")
    if "input_ids" not in kwargs:
        kwargs["input_ids"] = args[0]
    x = kwargs.pop("input_ids")

    if jnp.issubdtype(x.dtype, jnp.integer):
        return _forward_ids(x, params["wte"], params["wpe"],
                            params["w1"], params["b1"],
                            params["w2"], params["b2"])
    # dtype != long -> route to inputs_embeds (as in the PyTorch container)
    return _forward_embeds(x, params["wpe"],
                           params["w1"], params["b1"],
                           params["w2"], params["b2"])


def _reference_forward(params, x):
    """Pure-JAX reference (same bf16-operand / f32-accumulate matmul recipe)."""
    if jnp.issubdtype(x.dtype, jnp.integer):
        e = params["wte"][x]                               # exact f32 gather
    else:
        e = x.astype(jnp.float32)
    b, s, h = e.shape
    e = e + params["wpe"][None, :s, :]
    ef = e.reshape(b * s, h)
    mu = jnp.mean(ef, axis=-1, keepdims=True)
    xc = ef - mu
    var = jnp.mean(xc * xc, axis=-1, keepdims=True)
    xn = xc * lax.rsqrt(var + _LN_EPS)
    hh = jnp.dot(xn.astype(jnp.bfloat16), params["w1"],
                 preferred_element_type=jnp.float32) + params["b1"]
    hh2 = hh * hh
    hh = 0.5 * hh * (1.0 + jnp.tanh(_GELU_C0 * (hh + _GELU_C1 * hh2 * hh)))
    logits = jnp.dot(hh.astype(jnp.bfloat16), params["w2"],
                     preferred_element_type=jnp.float32) + params["b2"]
    return logits.reshape(b, s, -1)


if __name__ == "__main__":
    params = make_params()
    k_ids, k_emb = jax.random.split(jax.random.PRNGKey(0))

    # Path 1: integer input_ids (torch.long -> embedding lookup)
    input_ids = jax.random.randint(k_ids, (B, S), 0, VOCAB, dtype=jnp.int32)
    logits_ids = hugging_face_container_forward(params, inputs=input_ids)
    logits_ids = jax.block_until_ready(logits_ids)

    # Path 2: float inputs -> routed to inputs_embeds
    inputs_embeds = jax.random.normal(k_emb, (B, S, H), jnp.float32)
    logits_emb = hugging_face_container_forward(params, inputs_embeds)
    logits_emb = jax.block_until_ready(logits_emb)

    # correctness check against pure-JAX reference
    ref_ids = _reference_forward(params, input_ids)
    ref_emb = _reference_forward(params, inputs_embeds)
    assert logits_ids.shape == (B, S, V)
    assert logits_emb.shape == (B, S, V)
    assert jnp.allclose(logits_ids, ref_ids, atol=1e-2, rtol=1e-2)
    assert jnp.allclose(logits_emb, ref_emb, atol=1e-2, rtol=1e-2)

    print("KERNEL_OK")
</pallas_src>

<mosaic_0001>
module attributes {stable_mosaic.version = 11 : i64} {
  func.func @_lm_ids_kernel(%arg0: i32, %arg1: memref<16xi32, #tpu.memory_space<smem>>, %arg2: memref<128x128xf32, #tpu.memory_space<vmem>>, %arg3: memref<8x128xf32, #tpu.memory_space<vmem>>, %arg4: memref<128x128xbf16, #tpu.memory_space<vmem>>, %arg5: memref<1x128xf32, #tpu.memory_space<vmem>>, %arg6: memref<128x128xbf16, #tpu.memory_space<vmem>>, %arg7: memref<1x128xf32, #tpu.memory_space<vmem>>, %arg8: memref<16x128xf32, #tpu.memory_space<vmem>>, %arg9: memref<16x128xf32, #tpu.memory_space<vmem>>) attributes {dimension_semantics = [#tpu.dimension_semantics<arbitrary>], iteration_bounds = array<i64: 1>, scalar_prefetch = 1 : i64, scratch_operands = 1 : i64, tpu.core_type = #tpu.core_type<tc>, window_params = [{pipeline_mode = #tpu.pipeline_mode<synchronous>, transform_indices = @transform_0, window_bounds = array<i64: 128, 128>}, {pipeline_mode = #tpu.pipeline_mode<synchronous>, transform_indices = @transform_1, window_bounds = array<i64: 8, 128>}, {pipeline_mode = #tpu.pipeline_mode<synchronous>, transform_indices = @transform_2, window_bounds = array<i64: 128, 128>}, {pipeline_mode = #tpu.pipeline_mode<synchronous>, transform_indices = @transform_3, window_bounds = array<i64: 1, 128>}, {pipeline_mode = #tpu.pipeline_mode<synchronous>, transform_indices = @transform_4, window_bounds = array<i64: 128, 128>}, {pipeline_mode = #tpu.pipeline_mode<synchronous>, transform_indices = @transform_5, window_bounds = array<i64: 1, 128>}, {pipeline_mode = #tpu.pipeline_mode<synchronous>, transform_indices = @transform_6, window_bounds = array<i64: 16, 128>}]} {
    %c0 = arith.constant 0 : index
    %0 = memref.load %arg1[%c0] : memref<16xi32, #tpu.memory_space<smem>>
    %c0_i32 = arith.constant 0 : i32
    %c127_i32 = arith.constant 127 : i32
    %1 = arith.maxsi %c0_i32, %0 : i32
    %2 = arith.minsi %c127_i32, %1 : i32
    %3 = arith.index_cast %2 : i32 to index
    %c0_0 = arith.constant 0 : index
    %4 = vector.load %arg2[%3, %c0_0] : memref<128x128xf32, #tpu.memory_space<vmem>>, vector<1x128xf32>
    %c0_1 = arith.constant 0 : index
    %c0_2 = arith.constant 0 : index
    %5 = vector.load %arg3[%c0_1, %c0_2] : memref<8x128xf32, #tpu.memory_space<vmem>>, vector<1x128xf32>
    %6 = arith.addf %4, %5 : vector<1x128xf32>
    %c0_3 = arith.constant 0 : index
    %c0_4 = arith.constant 0 : index
    %7 = vector.load %arg9[%c0_3, %c0_4] : memref<16x128xf32, #tpu.memory_space<vmem>>, vector<1x128xf32>
    tpu.vector_store %arg9[%c0_3, %c0_4], %6 {strides = array<i32>} : memref<16x128xf32, #tpu.memory_space<vmem>>, vector<1x128xf32>,
    %c1 = arith.constant 1 : index
    %8 = memref.load %arg1[%c1] : memref<16xi32, #tpu.memory_space<smem>>
    %c0_i32_5 = arith.constant 0 : i32
    %c127_i32_6 = arith.constant 127 : i32
    %9 = arith.maxsi %c0_i32_5, %8 : i32
    %10 = arith.minsi %c127_i32_6, %9 : i32
    %11 = arith.index_cast %10 : i32 to index
    %c0_7 = arith.constant 0 : index
    %12 = vector.load %arg2[%11, %c0_7] : memref<128x128xf32, #tpu.memory_space<vmem>>, vector<1x128xf32>
    %c1_8 = arith.constant 1 : index
    %c0_9 = arith.constant 0 : index
    %13 = vector.load %arg3[%c1_8, %c0_9] : memref<8x128xf32, #tpu.memory_space<vmem>>, vector<1x128xf32>
    %14 = arith.addf %12, %13 : vector<1x128xf32>
    %c1_10 = arith.constant 1 : index
    %c0_11 = arith.constant 0 : index
    %15 = vector.load %arg9[%c1_10, %c0_11] : memref<16x128xf32, #tpu.memory_space<vmem>>, vector<1x128xf32>
    tpu.vector_store %arg9[%c1_10, %c0_11], %14 {strides = array<i32>} : memref<16x128xf32, #tpu.memory_space<vmem>>, vector<1x128xf32>,
    %c2 = arith.constant 2 : index
    %16 = memref.load %arg1[%c2] : memref<16xi32, #tpu.memory_space<smem>>
    %c0_i32_12 = arith.constant 0 : i32
    %c127_i32_13 = arith.constant 127 : i32
    %17 = arith.maxsi %c0_i32_12, %16 : i32
    %18 = arith.minsi %c127_i32_13, %17 : i32
    %19 = arith.index_cast %18 : i32 to index
    %c0_14 = arith.constant 0 : index
    %20 = vector.load %arg2[%19, %c0_14] : memref<128x128xf32, #tpu.memory_space<vmem>>, vector<1x128xf32>
    %c2_15 = arith.constant 2 : index
    %c0_16 = arith.constant 0 : index
    %21 = vector.load %arg3[%c2_15, %c0_16] : memref<8x128xf32, #tpu.memory_space<vmem>>, vector<1x128xf32>
    %22 = arith.addf %20, %21 : vector<1x128xf32>
    %c2_17 = arith.constant 2 : index
    %c0_18 = arith.constant 0 : index
    %23 = vector.load %arg9[%c2_17, %c0_18] : memref<16x128xf32, #tpu.memory_space<vmem>>, vector<1x128xf32>
    tpu.vector_store %arg9[%c2_17, %c0_18], %22 {strides = array<i32>} : memref<16x128xf32, #tpu.memory_space<vmem>>, vector<1x128xf32>,
    %c3 = arith.constant 3 : index
    %24 = memref.load %arg1[%c3] : memref<16xi32, #tpu.memory_space<smem>>
    %c0_i32_19 = arith.constant 0 : i32
    %c127_i32_20 = arith.constant 127 : i32
    %25 = arith.maxsi %c0_i32_19, %24 : i32
    %26 = arith.minsi %c127_i32_20, %25 : i32
    %27 = arith.index_cast %26 : i32 to index
    %c0_21 = arith.constant 0 : index
    %28 = vector.load %arg2[%27, %c0_21] : memref<128x128xf32, #tpu.memory_space<vmem>>, vector<1x128xf32>
    %c3_22 = arith.constant 3 : index
    %c0_23 = arith.constant 0 : index
    %29 = vector.load %arg3[%c3_22, %c0_23] : memref<8x128xf32, #tpu.memory_space<vmem>>, vector<1x128xf32>
    %30 = arith.addf %28, %29 : vector<1x128xf32>
    %c3_24 = arith.constant 3 : index
    %c0_25 = arith.constant 0 : index
    %31 = vector.load %arg9[%c3_24, %c0_25] : memref<16x128xf32, #tpu.memory_space<vmem>>, vector<1x128xf32>
    tpu.vector_store %arg9[%c3_24, %c0_25], %30 {strides = array<i32>} : memref<16x128xf32, #tpu.memory_space<vmem>>, vector<1x128xf32>,
    %c4 = arith.constant 4 : index
    %32 = memref.load %arg1[%c4] : memref<16xi32, #tpu.memory_space<smem>>
    %c0_i32_26 = arith.constant 0 : i32
    %c127_i32_27 = arith.constant 127 : i32
    %33 = arith.maxsi %c0_i32_26, %32 : i32
    %34 = arith.minsi %c127_i32_27, %33 : i32
    %35 = arith.index_cast %34 : i32 to index
    %c0_28 = arith.constant 0 : index
    %36 = vector.load %arg2[%35, %c0_28] : memref<128x128xf32, #tpu.memory_space<vmem>>, vector<1x128xf32>
    %c4_29 = arith.constant 4 : index
    %c0_30 = arith.constant 0 : index
    %37 = vector.load %arg3[%c4_29, %c0_30] : memref<8x128xf32, #tpu.memory_space<vmem>>, vector<1x128xf32>
    %38 = arith.addf %36, %37 : vector<1x128xf32>
    %c4_31 = arith.constant 4 : index
    %c0_32 = arith.constant 0 : index
    %39 = vector.load %arg9[%c4_31, %c0_32] : memref<16x128xf32, #tpu.memory_space<vmem>>, vector<1x128xf32>
    tpu.vector_store %arg9[%c4_31, %c0_32], %38 {strides = array<i32>} : memref<16x128xf32, #tpu.memory_space<vmem>>, vector<1x128xf32>,
    %c5 = arith.constant 5 : index
    %40 = memref.load %arg1[%c5] : memref<16xi32, #tpu.memory_space<smem>>
    %c0_i32_33 = arith.constant 0 : i32
    %c127_i32_34 = arith.constant 127 : i32
    %41 = arith.maxsi %c0_i32_33, %40 : i32
    %42 = arith.minsi %c127_i32_34, %41 : i32
    %43 = arith.index_cast %42 : i32 to index
    %c0_35 = arith.constant 0 : index
    %44 = vector.load %arg2[%43, %c0_35] : memref<128x128xf32, #tpu.memory_space<vmem>>, vector<1x128xf32>
    %c5_36 = arith.constant 5 : index
    %c0_37 = arith.constant 0 : index
    %45 = vector.load %arg3[%c5_36, %c0_37] : memref<8x128xf32, #tpu.memory_space<vmem>>, vector<1x128xf32>
    %46 = arith.addf %44, %45 : vector<1x128xf32>
    %c5_38 = arith.constant 5 : index
    %c0_39 = arith.constant 0 : index
    %47 = vector.load %arg9[%c5_38, %c0_39] : memref<16x128xf32, #tpu.memory_space<vmem>>, vector<1x128xf32>
    tpu.vector_store %arg9[%c5_38, %c0_39], %46 {strides = array<i32>} : memref<16x128xf32, #tpu.memory_space<vmem>>, vector<1x128xf32>,
    %c6 = arith.constant 6 : index
    %48 = memref.load %arg1[%c6] : memref<16xi32, #tpu.memory_space<smem>>
    %c0_i32_40 = arith.constant 0 : i32
    %c127_i32_41 = arith.constant 127 : i32
    %49 = arith.maxsi %c0_i32_40, %48 : i32
    %50 = arith.minsi %c127_i32_41, %49 : i32
    %51 = arith.index_cast %50 : i32 to index
    %c0_42 = arith.constant 0 : index
    %52 = vector.load %arg2[%51, %c0_42] : memref<128x128xf32, #tpu.memory_space<vmem>>, vector<1x128xf32>
    %c6_43 = arith.constant 6 : index
    %c0_44 = arith.constant 0 : index
    %53 = vector.load %arg3[%c6_43, %c0_44] : memref<8x128xf32, #tpu.memory_space<vmem>>, vector<1x128xf32>
    %54 = arith.addf %52, %53 : vector<1x128xf32>
    %c6_45 = arith.constant 6 : index
    %c0_46 = arith.constant 0 : index
    %55 = vector.load %arg9[%c6_45, %c0_46] : memref<16x128xf32, #tpu.memory_space<vmem>>, vector<1x128xf32>
    tpu.vector_store %arg9[%c6_45, %c0_46], %54 {strides = array<i32>} : memref<16x128xf32, #tpu.memory_space<vmem>>, vector<1x128xf32>,
    %c7 = arith.constant 7 : index
    %56 = memref.load %arg1[%c7] : memref<16xi32, #tpu.memory_space<smem>>
    %c0_i32_47 = arith.constant 0 : i32
    %c127_i32_48 = arith.constant 127 : i32
    %57 = arith.maxsi %c0_i32_47, %56 : i32
    %58 = arith.minsi %c127_i32_48, %57 : i32
    %59 = arith.index_cast %58 : i32 to index
    %c0_49 = arith.constant 0 : index
    %60 = vector.load %arg2[%59, %c0_49] : memref<128x128xf32, #tpu.memory_space<vmem>>, vector<1x128xf32>
    %c7_50 = arith.constant 7 : index
    %c0_51 = arith.constant 0 : index
    %61 = vector.load %arg3[%c7_50, %c0_51] : memref<8x128xf32, #tpu.memory_space<vmem>>, vector<1x128xf32>
    %62 = arith.addf %60, %61 : vector<1x128xf32>
    %c7_52 = arith.constant 7 : index
    %c0_53 = arith.constant 0 : index
    %63 = vector.load %arg9[%c7_52, %c0_53] : memref<16x128xf32, #tpu.memory_space<vmem>>, vector<1x128xf32>
    tpu.vector_store %arg9[%c7_52, %c0_53], %62 {strides = array<i32>} : memref<16x128xf32, #tpu.memory_space<vmem>>, vector<1x128xf32>,
    %c8 = arith.constant 8 : index
    %64 = memref.load %arg1[%c8] : memref<16xi32, #tpu.memory_space<smem>>
    %c0_i32_54 = arith.constant 0 : i32
    %c127_i32_55 = arith.constant 127 : i32
    %65 = arith.maxsi %c0_i32_54, %64 : i32
    %66 = arith.minsi %c127_i32_55, %65 : i32
    %67 = arith.index_cast %66 : i32 to index
    %c0_56 = arith.constant 0 : index
    %68 = vector.load %arg2[%67, %c0_56] : memref<128x128xf32, #tpu.memory_space<vmem>>, vector<1x128xf32>
    %c0_57 = arith.constant 0 : index
    %c0_58 = arith.constant 0 : index
    %69 = vector.load %arg3[%c0_57, %c0_58] : memref<8x128xf32, #tpu.memory_space<vmem>>, vector<1x128xf32>
    %70 = arith.addf %68, %69 : vector<1x128xf32>
    %c8_59 = arith.constant 8 : index
    %c0_60 = arith.constant 0 : index
    %71 = vector.load %arg9[%c8_59, %c0_60] : memref<16x128xf32, #tpu.memory_space<vmem>>, vector<1x128xf32>
    tpu.vector_store %arg9[%c8_59, %c0_60], %70 {strides = array<i32>} : memref<16x128xf32, #tpu.memory_space<vmem>>, vector<1x128xf32>,
    %c9 = arith.constant 9 : index
    %72 = memref.load %arg1[%c9] : memref<16xi32, #tpu.memory_space<smem>>
    %c0_i32_61 = arith.constant 0 : i32
    %c127_i32_62 = arith.constant 127 : i32
    %73 = arith.maxsi %c0_i32_61, %72 : i32
    %74 = arith.minsi %c127_i32_62, %73 : i32
    %75 = arith.index_cast %74 : i32 to index
    %c0_63 = arith.constant 0 : index
    %76 = vector.load %arg2[%75, %c0_63] : memref<128x128xf32, #tpu.memory_space<vmem>>, vector<1x128xf32>
    %c1_64 = arith.constant 1 : index
    %c0_65 = arith.constant 0 : index
    %77 = vector.load %arg3[%c1_64, %c0_65] : memref<8x128xf32, #tpu.memory_space<vmem>>, vector<1x128xf32>
    %78 = arith.addf %76, %77 : vector<1x128xf32>
    %c9_66 = arith.constant 9 : index
    %c0_67 = arith.constant 0 : index
    %79 = vector.load %arg9[%c9_66, %c0_67] : memref<16x128xf32, #tpu.memory_space<vmem>>, vector<1x128xf32>
    tpu.vector_store %arg9[%c9_66, %c0_67], %78 {strides = array<i32>} : memref<16x128xf32, #tpu.memory_space<vmem>>, vector<1x128xf32>,
    %c10 = arith.constant 10 : index
    %80 = memref.load %arg1[%c10] : memref<16xi32, #tpu.memory_space<smem>>
    %c0_i32_68 = arith.constant 0 : i32
    %c127_i32_69 = arith.constant 127 : i32
    %81 = arith.maxsi %c0_i32_68, %80 : i32
    %82 = arith.minsi %c127_i32_69, %81 : i32
    %83 = arith.index_cast %82 : i32 to index
    %c0_70 = arith.constant 0 : index
    %84 = vector.load %arg2[%83, %c0_70] : memref<128x128xf32, #tpu.memory_space<vmem>>, vector<1x128xf32>
    %c2_71 = arith.constant 2 : index
    %c0_72 = arith.constant 0 : index
    %85 = vector.load %arg3[%c2_71, %c0_72] : memref<8x128xf32, #tpu.memory_space<vmem>>, vector<1x128xf32>
    %86 = arith.addf %84, %85 : vector<1x128xf32>
    %c10_73 = arith.constant 10 : index
    %c0_74 = arith.constant 0 : index
    %87 = vector.load %arg9[%c10_73, %c0_74] : memref<16x128xf32, #tpu.memory_space<vmem>>, vector<1x128xf32>
    tpu.vector_store %arg9[%c10_73, %c0_74], %86 {strides = array<i32>} : memref<16x128xf32, #tpu.memory_space<vmem>>, vector<1x128xf32>,
    %c11 = arith.constant 11 : index
    %88 = memref.load %arg1[%c11] : memref<16xi32, #tpu.memory_space<smem>>
    %c0_i32_75 = arith.constant 0 : i32
    %c127_i32_76 = arith.constant 127 : i32
    %89 = arith.maxsi %c0_i32_75, %88 : i32
    %90 = arith.minsi %c127_i32_76, %89 : i32
    %91 = arith.index_cast %90 : i32 to index
    %c0_77 = arith.constant 0 : index
    %92 = vector.load %arg2[%91, %c0_77] : memref<128x128xf32, #tpu.memory_space<vmem>>, vector<1x128xf32>
    %c3_78 = arith.constant 3 : index
    %c0_79 = arith.constant 0 : index
    %93 = vector.load %arg3[%c3_78, %c0_79] : memref<8x128xf32, #tpu.memory_space<vmem>>, vector<1x128xf32>
    %94 = arith.addf %92, %93 : vector<1x128xf32>
    %c11_80 = arith.constant 11 : index
    %c0_81 = arith.constant 0 : index
    %95 = vector.load %arg9[%c11_80, %c0_81] : memref<16x128xf32, #tpu.memory_space<vmem>>, vector<1x128xf32>
    tpu.vector_store %arg9[%c11_80, %c0_81], %94 {strides = array<i32>} : memref<16x128xf32, #tpu.memory_space<vmem>>, vector<1x128xf32>,
    %c12 = arith.constant 12 : index
    %96 = memref.load %arg1[%c12] : memref<16xi32, #tpu.memory_space<smem>>
    %c0_i32_82 = arith.constant 0 : i32
    %c127_i32_83 = arith.constant 127 : i32
    %97 = arith.maxsi %c0_i32_82, %96 : i32
    %98 = arith.minsi %c127_i32_83, %97 : i32
    %99 = arith.index_cast %98 : i32 to index
    %c0_84 = arith.constant 0 : index
    %100 = vector.load %arg2[%99, %c0_84] : memref<128x128xf32, #tpu.memory_space<vmem>>, vector<1x128xf32>
    %c4_85 = arith.constant 4 : index
    %c0_86 = arith.constant 0 : index
    %101 = vector.load %arg3[%c4_85, %c0_86] : memref<8x128xf32, #tpu.memory_space<vmem>>, vector<1x128xf32>
    %102 = arith.addf %100, %101 : vector<1x128xf32>
    %c12_87 = arith.constant 12 : index
    %c0_88 = arith.constant 0 : index
    %103 = vector.load %arg9[%c12_87, %c0_88] : memref<16x128xf32, #tpu.memory_space<vmem>>, vector<1x128xf32>
    tpu.vector_store %arg9[%c12_87, %c0_88], %102 {strides = array<i32>} : memref<16x128xf32, #tpu.memory_space<vmem>>, vector<1x128xf32>,
    %c13 = arith.constant 13 : index
    %104 = memref.load %arg1[%c13] : memref<16xi32, #tpu.memory_space<smem>>
    %c0_i32_89 = arith.constant 0 : i32
    %c127_i32_90 = arith.constant 127 : i32
    %105 = arith.maxsi %c0_i32_89, %104 : i32
    %106 = arith.minsi %c127_i32_90, %105 : i32
    %107 = arith.index_cast %106 : i32 to index
    %c0_91 = arith.constant 0 : index
    %108 = vector.load %arg2[%107, %c0_91] : memref<128x128xf32, #tpu.memory_space<vmem>>, vector<1x128xf32>
    %c5_92 = arith.constant 5 : index
    %c0_93 = arith.constant 0 : index
    %109 = vector.load %arg3[%c5_92, %c0_93] : memref<8x128xf32, #tpu.memory_space<vmem>>, vector<1x128xf32>
    %110 = arith.addf %108, %109 : vector<1x128xf32>
    %c13_94 = arith.constant 13 : index
    %c0_95 = arith.constant 0 : index
    %111 = vector.load %arg9[%c13_94, %c0_95] : memref<16x128xf32, #tpu.memory_space<vmem>>, vector<1x128xf32>
    tpu.vector_store %arg9[%c13_94, %c0_95], %110 {strides = array<i32>} : memref<16x128xf32, #tpu.memory_space<vmem>>, vector<1x128xf32>,
    %c14 = arith.constant 14 : index
    %112 = memref.load %arg1[%c14] : memref<16xi32, #tpu.memory_space<smem>>
    %c0_i32_96 = arith.constant 0 : i32
    %c127_i32_97 = arith.constant 127 : i32
    %113 = arith.maxsi %c0_i32_96, %112 : i32
    %114 = arith.minsi %c127_i32_97, %113 : i32
    %115 = arith.index_cast %114 : i32 to index
    %c0_98 = arith.constant 0 : index
    %116 = vector.load %arg2[%115, %c0_98] : memref<128x128xf32, #tpu.memory_space<vmem>>, vector<1x128xf32>
    %c6_99 = arith.constant 6 : index
    %c0_100 = arith.constant 0 : index
    %117 = vector.load %arg3[%c6_99, %c0_100] : memref<8x128xf32, #tpu.memory_space<vmem>>, vector<1x128xf32>
    %118 = arith.addf %116, %117 : vector<1x128xf32>
    %c14_101 = arith.constant 14 : index
    %c0_102 = arith.constant 0 : index
    %119 = vector.load %arg9[%c14_101, %c0_102] : memref<16x128xf32, #tpu.memory_space<vmem>>, vector<1x128xf32>
    tpu.vector_store %arg9[%c14_101, %c0_102], %118 {strides = array<i32>} : memref<16x128xf32, #tpu.memory_space<vmem>>, vector<1x128xf32>,
    %c15 = arith.constant 15 : index
    %120 = memref.load %arg1[%c15] : memref<16xi32, #tpu.memory_space<smem>>
    %c0_i32_103 = arith.constant 0 : i32
    %c127_i32_104 = arith.constant 127 : i32
    %121 = arith.maxsi %c0_i32_103, %120 : i32
    %122 = arith.minsi %c127_i32_104, %121 : i32
    %123 = arith.index_cast %122 : i32 to index
    %c0_105 = arith.constant 0 : index
    %124 = vector.load %arg2[%123, %c0_105] : memref<128x128xf32, #tpu.memory_space<vmem>>, vector<1x128xf32>
    %c7_106 = arith.constant 7 : index
    %c0_107 = arith.constant 0 : index
    %125 = vector.load %arg3[%c7_106, %c0_107] : memref<8x128xf32, #tpu.memory_space<vmem>>, vector<1x128xf32>
    %126 = arith.addf %124, %125 : vector<1x128xf32>
    %c15_108 = arith.constant 15 : index
    %c0_109 = arith.constant 0 : index
    %127 = vector.load %arg9[%c15_108, %c0_109] : memref<16x128xf32, #tpu.memory_space<vmem>>, vector<1x128xf32>
    tpu.vector_store %arg9[%c15_108, %c0_109], %126 {strides = array<i32>} : memref<16x128xf32, #tpu.memory_space<vmem>>, vector<1x128xf32>,
    %c0_110 = arith.constant 0 : index
    %c0_111 = arith.constant 0 : index
    %128 = vector.load %arg9[%c0_110, %c0_111] : memref<16x128xf32, #tpu.memory_space<vmem>>, vector<16x128xf32>
    %cst = arith.constant dense<0.000000e+00> : vector<16xf32>
    %129 = vector.multi_reduction <add>, %128, %cst [1] : vector<16x128xf32> to vector<16xf32>
    %130 = vector.shape_cast %129 : vector<16xf32> to vector<16x1xf32>
    %cst_112 = arith.constant 1.280000e+02 : f32
    %131 = vector.broadcast %cst_112 : f32 to vector<16x1xf32>
    %132 = arith.divf %130, %131 : vector<16x1xf32>
    %133 = vector.broadcast %132 : vector<16x1xf32> to vector<16x128xf32>
    %134 = arith.subf %128, %133 : vector<16x128xf32>
    %135 = arith.mulf %134, %134 : vector<16x128xf32>
    %cst_113 = arith.constant dense<0.000000e+00> : vector<16xf32>
    %136 = vector.multi_reduction <add>, %135, %cst_113 [1] : vector<16x128xf32> to vector<16xf32>
    %137 = vector.shape_cast %136 : vector<16xf32> to vector<16x1xf32>
    %cst_114 = arith.constant 1.280000e+02 : f32
    %138 = vector.broadcast %cst_114 : f32 to vector<16x1xf32>
    %139 = arith.divf %137, %138 : vector<16x1xf32>
    %cst_115 = arith.constant 9.99999974E-6 : f32
    %140 = vector.broadcast %cst_115 : f32 to vector<16x1xf32>
    %141 = arith.addf %139, %140 : vector<16x1xf32>
    %142 = math.rsqrt %141 : vector<16x1xf32>
    %143 = vector.broadcast %142 : vector<16x1xf32> to vector<16x128xf32>
    %144 = arith.mulf %134, %143 : vector<16x128xf32>
    %145 = arith.truncf %144 : vector<16x128xf32> to vector<16x128xbf16>
    %c0_116 = arith.constant 0 : index
    %c0_117 = arith.constant 0 : index
    %146 = vector.load %arg4[%c0_116, %c0_117] : memref<128x128xbf16, #tpu.memory_space<vmem>>, vector<128x128xbf16>
    %cst_118 = arith.constant dense<0.000000e+00> : vector<16x128xf32>
    %147 = tpu.matmul %145, %146, %cst_118 {dimension_numbers = #tpu.dot_dimension_numbers<[1], [0], [0], [1], [0, 0, 1, 1], [], []>} : vector<16x128xbf16>, vector<128x128xbf16>, vector<16x128xf32> -> vector<16x128xf32>
    %c0_119 = arith.constant 0 : index
    %c0_120 = arith.constant 0 : index
    %148 = vector.load %arg5[%c0_119, %c0_120] : memref<1x128xf32, #tpu.memory_space<vmem>>, vector<1x128xf32>
    %149 = vector.broadcast %148 : vector<1x128xf32> to vector<16x128xf32>
    %150 = arith.addf %147, %149 : vector<16x128xf32>
    %151 = arith.mulf %150, %150 : vector<16x128xf32>
    %cst_121 = arith.constant 5.000000e-01 : f32
    %152 = vector.broadcast %cst_121 : f32 to vector<16x128xf32>
    %153 = arith.mulf %152, %150 : vector<16x128xf32>
    %cst_122 = arith.constant 4.471500e-02 : f32
    %154 = vector.broadcast %cst_122 : f32 to vector<16x128xf32>
    %155 = arith.mulf %154, %151 : vector<16x128xf32>
    %156 = arith.mulf %155, %150 : vector<16x128xf32>
    %157 = arith.addf %150, %156 : vector<16x128xf32>
    %cst_123 = arith.constant 0.797884583 : f32
    %158 = vector.broadcast %cst_123 : f32 to vector<16x128xf32>
    %159 = arith.mulf %158, %157 : vector<16x128xf32>
    %160 = math.tanh %159 : vector<16x128xf32>
    %cst_124 = arith.constant 1.000000e+00 : f32
    %161 = vector.broadcast %cst_124 : f32 to vector<16x128xf32>
    %162 = arith.addf %161, %160 : vector<16x128xf32>
    %163 = arith.mulf %153, %162 : vector<16x128xf32>
    %164 = arith.truncf %163 : vector<16x128xf32> to vector<16x128xbf16>
    %c0_125 = arith.constant 0 : index
    %c0_126 = arith.constant 0 : index
    %165 = vector.load %arg6[%c0_125, %c0_126] : memref<128x128xbf16, #tpu.memory_space<vmem>>, vector<128x128xbf16>
    %cst_127 = arith.constant dense<0.000000e+00> : vector<16x128xf32>
    %166 = tpu.matmul %164, %165, %cst_127 {dimension_numbers = #tpu.dot_dimension_numbers<[1], [0], [0], [1], [0, 0, 1, 1], [], []>} : vector<16x128xbf16>, vector<128x128xbf16>, vector<16x128xf32> -> vector<16x128xf32>
    %c0_128 = arith.constant 0 : index
    %c0_129 = arith.constant 0 : index
    %167 = vector.load %arg7[%c0_128, %c0_129] : memref<1x128xf32, #tpu.memory_space<vmem>>, vector<1x128xf32>
    %168 = vector.broadcast %167 : vector<1x128xf32> to vector<16x128xf32>
    %169 = arith.addf %166, %168 : vector<16x128xf32>
    %c0_130 = arith.constant 0 : index
    %c0_131 = arith.constant 0 : index
    %170 = vector.load %arg8[%c0_130, %c0_131] : memref<16x128xf32, #tpu.memory_space<vmem>>, vector<16x128xf32>
    tpu.vector_store %arg8[%c0_130, %c0_131], %169 {strides = array<i32>} : memref<16x128xf32, #tpu.memory_space<vmem>>, vector<16x128xf32>,
    return
  }
  func.func @transform_0(%arg0: i32, %arg1: memref<16xi32, #tpu.memory_space<smem>>) -> (i32, i32) {
    %c0_i32 = arith.constant 0 : i32
    %c0_i32_0 = arith.constant 0 : i32
    %c0_i32_1 = arith.constant 0 : i32
    return %c0_i32, %c0_i32_0 : i32, i32
  }
  func.func @transform_1(%arg0: i32, %arg1: memref<16xi32, #tpu.memory_space<smem>>) -> (i32, i32) {
    %c0_i32 = arith.constant 0 : i32
    %c0_i32_0 = arith.constant 0 : i32
    %c0_i32_1 = arith.constant 0 : i32
    return %c0_i32, %c0_i32_0 : i32, i32
  }
  func.func @transform_2(%arg0: i32, %arg1: memref<16xi32, #tpu.memory_space<smem>>) -> (i32, i32) {
    %c0_i32 = arith.constant 0 : i32
    %c0_i32_0 = arith.constant 0 : i32
    %c0_i32_1 = arith.constant 0 : i32
    return %c0_i32, %c0_i32_0 : i32, i32
  }
  func.func @transform_3(%arg0: i32, %arg1: memref<16xi32, #tpu.memory_space<smem>>) -> (i32, i32) {
    %c0_i32 = arith.constant 0 : i32
    %c0_i32_0 = arith.constant 0 : i32
    %c0_i32_1 = arith.constant 0 : i32
    return %c0_i32, %c0_i32_0 : i32, i32
  }
  func.func @transform_4(%arg0: i32, %arg1: memref<16xi32, #tpu.memory_space<smem>>) -> (i32, i32) {
    %c0_i32 = arith.constant 0 : i32
    %c0_i32_0 = arith.constant 0 : i32
    %c0_i32_1 = arith.constant 0 : i32
    return %c0_i32, %c0_i32_0 : i32, i32
  }
  func.func @transform_5(%arg0: i32, %arg1: memref<16xi32, #tpu.memory_space<smem>>) -> (i32, i32) {
    %c0_i32 = arith.constant 0 : i32
    %c0_i32_0 = arith.constant 0 : i32
    %c0_i32_1 = arith.constant 0 : i32
    return %c0_i32, %c0_i32_0 : i32, i32
  }
  func.func @transform_6(%arg0: i32, %arg1: memref<16xi32, #tpu.memory_space<smem>>) -> (i32, i32) {
    %c0_i32 = arith.constant 0 : i32
    %c0_i32_0 = arith.constant 0 : i32
    %c0_i32_1 = arith.constant 0 : i32
    return %c0_i32, %c0_i32_0 : i32, i32
  }
}

</mosaic_0001>

<llo_original>
// kernel: _forward_ids.1
$region0: #{_forward_ids.1}
  #allocation0 [shape = 'u32[]', space=smem, size = 0x4, offset = 0x4, fixed_abs, tag = 'smem constant byte address 0x4 - core index']
  #allocation1 [shape = 'u32[144,128]{1,0:T(1,128)}', space=vmem, size = 0x12000, scoped, tag = 'internal scratch']
  #allocation2 [shape = 'f32[16,128]{1,0:T(8,128)}', space=vmem, size = 0x2000, scoped, tag = 'scratch operand']
  #allocation3 [shape = 's32[1]{0}', space=sflag, size = 0x4, scoped, tag = 'scoped memory for _forward_ids.1']
  #allocation4 [shape = 'u8[512]{0}', space=smem, size = 0x200, scoped, tag = 'prefetched SMEM operand 0']
  %s0 = inlined_call_operand.vmem [shape: s32[16], index: 0, kind: input, shape index: {}]
  %s1 = inlined_call_operand.hbm [shape: f32[128,128], index: 1, kind: input, shape index: {}]
  %s2 = inlined_call_operand.vmem [shape: f32[8,128], index: 2, kind: input, shape index: {}]
  %s3 = inlined_call_operand.hbm [shape: bf16[128,128], index: 3, kind: input, shape index: {}]
  %s4 = inlined_call_operand.vmem [shape: f32[1,128], index: 4, kind: input, shape index: {}]
  %s5 = inlined_call_operand.hbm [shape: bf16[128,128], index: 5, kind: input, shape index: {}]
  %s6 = inlined_call_operand.vmem [shape: f32[1,128], index: 6, kind: input, shape index: {}]
  %s7 = inlined_call_operand.hbm [shape: f32[16,128], index: 7, kind: output, shape index: {}]
  %s8 = sld [smem:[#allocation0]]
  $region46: #{_forward_ids.1} parent=0
    _
  %s10 = ssub.s32 1, %s8
  %s11 = scalar_select 0, %s10, %s8
  %s12 = sshll.u32 %s0, 4
  %s13 = int_to_ptr.vmem [resolvable:$true] %s12
  %15 = dma.vmem_to_smem %s13, 16, [#allocation4], [#allocation3]
  %16 = dma.done [#allocation3], 16
  %17 = sfence
  $region1: #{_forward_ids.1} parent=0
    #allocation5 [shape = 'u8[65536]{0}', space=vmem, size = 0x10000, scoped, tag = 'input window, operand 1, single buffered']
    #allocation6 [shape = 's32[1]{0}', space=sflag, size = 0x4, scoped, tag = 'scoped memory for _forward_ids.1']
    #allocation7 [shape = 's32[1]{0}', space=sflag, size = 0x4, scoped, tag = 'scoped memory for _forward_ids.1']
    #allocation8 [shape = 'u8[32768]{0}', space=vmem, size = 0x8000, scoped, tag = 'input window, operand 3, single buffered']
    #allocation9 [shape = 's32[1]{0}', space=sflag, size = 0x4, scoped, tag = 'scoped memory for _forward_ids.1']
    #allocation10 [shape = 'u8[32768]{0}', space=vmem, size = 0x8000, scoped, tag = 'input window, operand 5, single buffered']
    #allocation11 [shape = 'u8[8192]{0}', space=vmem, size = 0x2000, scoped, tag = 'output window, operand 0, single buffered']
    %18 = vsyncpa [#allocation6], 0
    %19 = vsyncpa [#allocation9], 0
    %20 = vsyncpa [#allocation7], 0
    // Predicated region
    $region2: #{_forward_ids.1} parent=1 // pred_check
      _
    $region3: #{_forward_ids.1} parent=1 // pred_check_branch
      %22 = sbr.rel (0) target = $region5
    $region4: #{_forward_ids.1} parent=1 // pred_region
      %s24 = ssub.s32 2048, 2048
      %25 = vsyncadd [#allocation6], %s24
      %s26 = sshll.u32 [#allocation5], 4
      %s27 = int_to_ptr.vmem [resolvable:$true] %s26
      %32 = dma.hbm_to_vmem [thread:$0]  %s1, 2048, %s27, [#allocation6], 128, 128, 8
    $region5: #{_forward_ids.1} parent=1 // pred_fallthru
      _
    // Predicated region
    $region6: #{_forward_ids.1} parent=1 // pred_check
      _
    $region7: #{_forward_ids.1} parent=1 // pred_check_branch
      %34 = sbr.rel (0) target = $region9
    $region8: #{_forward_ids.1} parent=1 // pred_region
      _
    $region9: #{_forward_ids.1} parent=1 // pred_fallthru
      _
    // Predicated region
    $region10: #{_forward_ids.1} parent=1 // pred_check
      _
    $region11: #{_forward_ids.1} parent=1 // pred_check_branch
      %36 = sbr.rel (0) target = $region13
    $region12: #{_forward_ids.1} parent=1 // pred_region
      %s38 = ssub.s32 1024, 1024
      %39 = vsyncadd [#allocation9], %s38
      %s40 = sshll.u32 [#allocation8], 4
      %s41 = int_to_ptr.vmem [resolvable:$true] %s40
      %46 = dma.hbm_to_vmem [thread:$0]  %s3, 1024, %s41, [#allocation9], 64, 64, 4
    $region13: #{_forward_ids.1} parent=1 // pred_fallthru
      _
    // Predicated region
    $region14: #{_forward_ids.1} parent=1 // pred_check
      _
    $region15: #{_forward_ids.1} parent=1 // pred_check_branch
      %48 = sbr.rel (0) target = $region17
    $region16: #{_forward_ids.1} parent=1 // pred_region
      _
    $region17: #{_forward_ids.1} parent=1 // pred_fallthru
      _
    // Predicated region
    $region18: #{_forward_ids.1} parent=1 // pred_check
      _
    $region19: #{_forward_ids.1} parent=1 // pred_check_branch
      %50 = sbr.rel (0) target = $region21
    $region20: #{_forward_ids.1} parent=1 // pred_region
      %s52 = ssub.s32 1024, 1024
      %53 = vsyncadd [#allocation9], %s52
      %s54 = sshll.u32 [#allocation10], 4
      %s55 = int_to_ptr.vmem [resolvable:$true] %s54
      %60 = dma.hbm_to_vmem [thread:$0]  %s5, 1024, %s55, [#allocation9], 64, 64, 4
    $region21: #{_forward_ids.1} parent=1 // pred_fallthru
      _
    // Predicated region
    $region22: #{_forward_ids.1} parent=1 // pred_check
      _
    $region23: #{_forward_ids.1} parent=1 // pred_check_branch
      %62 = sbr.rel (0) target = $region25
    $region24: #{_forward_ids.1} parent=1 // pred_region
      _
    $region25: #{_forward_ids.1} parent=1 // pred_fallthru
      _
    // Predicated region
    $region26: #{_forward_ids.1} parent=1 // pred_check
      _
    $region27: #{_forward_ids.1} parent=1 // pred_check_branch
      %64 = sbr.rel (0) target = $region29
    $region28: #{_forward_ids.1} parent=1 // pred_region
      %65 = dma.done [#allocation6], 2048
    $region29: #{_forward_ids.1} parent=1 // pred_fallthru
      _
    // Predicated region
    $region30: #{_forward_ids.1} parent=1 // pred_check
      _
    $region31: #{_forward_ids.1} parent=1 // pred_check_branch
      %67 = sbr.rel (0) target = $region33
    $region32: #{_forward_ids.1} parent=1 // pred_region
      %68 = dma.done [#allocation9], 1024
    $region33: #{_forward_ids.1} parent=1 // pred_fallthru
      _
    // Predicated region
    $region34: #{_forward_ids.1} parent=1 // pred_check
      _
    $region35: #{_forward_ids.1} parent=1 // pred_check_branch
      %70 = sbr.rel (0) target = $region37
    $region36: #{_forward_ids.1} parent=1 // pred_region
      %71 = dma.done [#allocation9], 1024
    $region37: #{_forward_ids.1} parent=1 // pred_fallthru
      _
    %s73 = sld [smem:[#allocation4]]
    %p74 = scmp.gt.s32.totalorder %s73, 0
    %s75 = scalar_select %p74, %s73, 0
    %p76 = scmp.lt.s32.totalorder %s75, 127
    %s77 = scalar_select %p76, %s75, 127
    %s78 = scalar_lea.vmem [#allocation5], %s77
    %v79 = vld [vmem:[%s78] sm:$0x1]
    %v80 = vld [vmem:[%s2] sm:$0x1]
    %v81 = vadd.f32 %v79, %v80
    %82 = vst [vmem:[#allocation2] sm:$0x1] %v81
    %s83 = sld [smem:[#allocation4 + $0x1]]
    %p84 = scmp.gt.s32.totalorder %s83, 0
    %s85 = scalar_select %p84, %s83, 0
    %p86 = scmp.lt.s32.totalorder %s85, 127
    %s87 = scalar_select %p86, %s85, 127
    %s88 = scalar_lea.vmem [#allocation5], %s87
    %v89 = vld [vmem:[%s88] sm:$0x1]
    %v90 = vld [vmem:[%s2 + $0x1] sm:$0x1]
    %v91 = vadd.f32 %v89, %v90
    %92 = vst [vmem:[#allocation2 + $0x1] sm:$0x1] %v91
    %s93 = sld [smem:[#allocation4 + $0x2]]
    %p94 = scmp.gt.s32.totalorder %s93, 0
    %s95 = scalar_select %p94, %s93, 0
    %p96 = scmp.lt.s32.totalorder %s95, 127
    %s97 = scalar_select %p96, %s95, 127
    %s98 = scalar_lea.vmem [#allocation5], %s97
    %v99 = vld [vmem:[%s98] sm:$0x1]
    %v100 = vld [vmem:[%s2 + $0x2] sm:$0x1]
    %v101 = vadd.f32 %v99, %v100
    %102 = vst [vmem:[#allocation2 + $0x2] sm:$0x1] %v101
    %s103 = sld [smem:[#allocation4 + $0x3]]
    %p104 = scmp.gt.s32.totalorder %s103, 0
    %s105 = scalar_select %p104, %s103, 0
    %p106 = scmp.lt.s32.totalorder %s105, 127
    %s107 = scalar_select %p106, %s105, 127
    %s108 = scalar_lea.vmem [#allocation5], %s107
    %v109 = vld [vmem:[%s108] sm:$0x1]
    %v110 = vld [vmem:[%s2 + $0x3] sm:$0x1]
    %v111 = vadd.f32 %v109, %v110
    %112 = vst [vmem:[#allocation2 + $0x3] sm:$0x1] %v111
    %s113 = sld [smem:[#allocation4 + $0x4]]
    %p114 = scmp.gt.s32.totalorder %s113, 0
    %s115 = scalar_select %p114, %s113, 0
    %p116 = scmp.lt.s32.totalorder %s115, 127
    %s117 = scalar_select %p116, %s115, 127
    %s118 = scalar_lea.vmem [#allocation5], %s117
    %v119 = vld [vmem:[%s118] sm:$0x1]
    %v120 = vld [vmem:[%s2 + $0x4] sm:$0x1]
    %v121 = vadd.f32 %v119, %v120
    %122 = vst [vmem:[#allocation2 + $0x4] sm:$0x1] %v121
    %s123 = sld [smem:[#allocation4 + $0x5]]
    %p124 = scmp.gt.s32.totalorder %s123, 0
    %s125 = scalar_select %p124, %s123, 0
    %p126 = scmp.lt.s32.totalorder %s125, 127
    %s127 = scalar_select %p126, %s125, 127
    %s128 = scalar_lea.vmem [#allocation5], %s127
    %v129 = vld [vmem:[%s128] sm:$0x1]
    %v130 = vld [vmem:[%s2 + $0x5] sm:$0x1]
    %v131 = vadd.f32 %v129, %v130
    %132 = vst [vmem:[#allocation2 + $0x5] sm:$0x1] %v131
    %s133 = sld [smem:[#allocation4 + $0x6]]
    %p134 = scmp.gt.s32.totalorder %s133, 0
    %s135 = scalar_select %p134, %s133, 0
    %p136 = scmp.lt.s32.totalorder %s135, 127
    %s137 = scalar_select %p136, %s135, 127
    %s138 = scalar_lea.vmem [#allocation5], %s137
    %v139 = vld [vmem:[%s138] sm:$0x1]
    %v140 = vld [vmem:[%s2 + $0x6] sm:$0x1]
    %v141 = vadd.f32 %v139, %v140
    %142 = vst [vmem:[#allocation2 + $0x6] sm:$0x1] %v141
    %s143 = sld [smem:[#allocation4 + $0x7]]
    %p144 = scmp.gt.s32.totalorder %s143, 0
    %s145 = scalar_select %p144, %s143, 0
    %p146 = scmp.lt.s32.totalorder %s145, 127
    %s147 = scalar_select %p146, %s145, 127
    %s148 = scalar_lea.vmem [#allocation5], %s147
    %v149 = vld [vmem:[%s148] sm:$0x1]
    %v150 = vld [vmem:[%s2 + $0x7] sm:$0x1]
    %v151 = vadd.f32 %v149, %v150
    %152 = vst [vmem:[#allocation2 + $0x7] sm:$0x1] %v151
    %s153 = sld [smem:[#allocation4 + $0x8]]
    %p154 = scmp.gt.s32.totalorder %s153, 0
    %s155 = scalar_select %p154, %s153, 0
    %p156 = scmp.lt.s32.totalorder %s155, 127
    %s157 = scalar_select %p156, %s155, 127
    %s158 = scalar_lea.vmem [#allocation5], %s157
    %v159 = vld [vmem:[%s158] sm:$0x1]
    %v160 = vld [vmem:[%s2] sm:$0x1]
    %v161 = vadd.f32 %v159, %v160
    %162 = vst [vmem:[#allocation2 + $0x8] sm:$0x1] %v161
    %s163 = sld [smem:[#allocation4 + $0x9]]
    %p164 = scmp.gt.s32.totalorder %s163, 0
    %s165 = scalar_select %p164, %s163, 0
    %p166 = scmp.lt.s32.totalorder %s165, 127
    %s167 = scalar_select %p166, %s165, 127
    %s168 = scalar_lea.vmem [#allocation5], %s167
    %v169 = vld [vmem:[%s168] sm:$0x1]
    %v170 = vld [vmem:[%s2 + $0x1] sm:$0x1]
    %v171 = vadd.f32 %v169, %v170
    %172 = vst [vmem:[#allocation2 + $0x9] sm:$0x1] %v171
    %s173 = sld [smem:[#allocation4 + $0xa]]
    %p174 = scmp.gt.s32.totalorder %s173, 0
    %s175 = scalar_select %p174, %s173, 0
    %p176 = scmp.lt.s32.totalorder %s175, 127
    %s177 = scalar_select %p176, %s175, 127
    %s178 = scalar_lea.vmem [#allocation5], %s177
    %v179 = vld [vmem:[%s178] sm:$0x1]
    %v180 = vld [vmem:[%s2 + $0x2] sm:$0x1]
    %v181 = vadd.f32 %v179, %v180
    %182 = vst [vmem:[#allocation2 + $0xa] sm:$0x1] %v181
    %s183 = sld [smem:[#allocation4 + $0xb]]
    %p184 = scmp.gt.s32.totalorder %s183, 0
    %s185 = scalar_select %p184, %s183, 0
    %p186 = scmp.lt.s32.totalorder %s185, 127
    %s187 = scalar_select %p186, %s185, 127
    %s188 = scalar_lea.vmem [#allocation5], %s187
    %v189 = vld [vmem:[%s188] sm:$0x1]
    %v190 = vld [vmem:[%s2 + $0x3] sm:$0x1]
    %v191 = vadd.f32 %v189, %v190
    %192 = vst [vmem:[#allocation2 + $0xb] sm:$0x1] %v191
    %s193 = sld [smem:[#allocation4 + $0xc]]
    %p194 = scmp.gt.s32.totalorder %s193, 0
    %s195 = scalar_select %p194, %s193, 0
    %p196 = scmp.lt.s32.totalorder %s195, 127
    %s197 = scalar_select %p196, %s195, 127
    %s198 = scalar_lea.vmem [#allocation5], %s197
    %v199 = vld [vmem:[%s198] sm:$0x1]
    %v200 = vld [vmem:[%s2 + $0x4] sm:$0x1]
    %v201 = vadd.f32 %v199, %v200
    %202 = vst [vmem:[#allocation2 + $0xc] sm:$0x1] %v201
    %s203 = sld [smem:[#allocation4 + $0xd]]
    %p204 = scmp.gt.s32.totalorder %s203, 0
    %s205 = scalar_select %p204, %s203, 0
    %p206 = scmp.lt.s32.totalorder %s205, 127
    %s207 = scalar_select %p206, %s205, 127
    %s208 = scalar_lea.vmem [#allocation5], %s207
    %v209 = vld [vmem:[%s208] sm:$0x1]
    %v210 = vld [vmem:[%s2 + $0x5] sm:$0x1]
    %v211 = vadd.f32 %v209, %v210
    %212 = vst [vmem:[#allocation2 + $0xd] sm:$0x1] %v211
    %s213 = sld [smem:[#allocation4 + $0xe]]
    %p214 = scmp.gt.s32.totalorder %s213, 0
    %s215 = scalar_select %p214, %s213, 0
    %p216 = scmp.lt.s32.totalorder %s215, 127
    %s217 = scalar_select %p216, %s215, 127
    %s218 = scalar_lea.vmem [#allocation5], %s217
    %v219 = vld [vmem:[%s218] sm:$0x1]
    %v220 = vld [vmem:[%s2 + $0x6] sm:$0x1]
    %v221 = vadd.f32 %v219, %v220
    %222 = vst [vmem:[#allocation2 + $0xe] sm:$0x1] %v221
    %s223 = sld [smem:[#allocation4 + $0xf]]
    %p224 = scmp.gt.s32.totalorder %s223, 0
    %s225 = scalar_select %p224, %s223, 0
    %p226 = scmp.lt.s32.totalorder %s225, 127
    %s227 = scalar_select %p226, %s225, 127
    %s228 = scalar_lea.vmem [#allocation5], %s227
    %v229 = vld [vmem:[%s228] sm:$0x1]
    %v230 = vld [vmem:[%s2 + $0x7] sm:$0x1]
    %v231 = vadd.f32 %v229, %v230
    %232 = vst [vmem:[#allocation2 + $0xf] sm:$0x1] %v231
    %v233 = vld [vmem:[#allocation2] sm:$0xff]
    %v234 = vld [vmem:[#allocation2 + $0x8] sm:$0xff]
    %235 = vadd.xlane.f32.xlu0 %v233
    %v236 = vpop.xlane.xlu0 %235
    %237 = vadd.xlane.f32.xlu0 %v234
    %v238 = vpop.xlane.xlu0 %237
    %v239 = vrcp.pop 128.0
    %v240 = vmul.f32 %v236, %v239
    %v241 = vmul.f32 %v238, %v239
    %v242 = vsub.f32 %v233, %v240
    %v243 = vsub.f32 %v234, %v241
    %v244 = vmul.f32 %v242, %v242
    %v245 = vmul.f32 %v243, %v243
    %246 = vadd.xlane.f32.xlu0 %v244
    %v247 = vpop.xlane.xlu0 %246
    %248 = vadd.xlane.f32.xlu0 %v245
    %v249 = vpop.xlane.xlu0 %248
    %v250 = vmul.f32 %v247, %v239
    %v251 = vmul.f32 %v249, %v239
    %v252 = vadd.f32 %v250, 1e-05
    %v253 = vadd.f32 %v251, 1e-05
    %v254 = vrsqrt.pop %v252
    %v255 = vrsqrt.pop %v253
    %v256 = vmul.f32 %v242, %v254
    %v257 = vmul.f32 %v243, %v255
    %v258 = vpack.c.bf16 %v257, %v256
    %v259 = vld [vmem:[#allocation8] sm:$0xf]
    %v260 = vld [vmem:[#allocation8 + $0x4] sm:$0xf]
    %v261 = vld [vmem:[#allocation8 + $0x8] sm:$0xf]
    %v262 = vld [vmem:[#allocation8 + $0xc] sm:$0xf]
    %v263 = vld [vmem:[#allocation8 + $0x10] sm:$0xf]
    %v264 = vld [vmem:[#allocation8 + $0x14] sm:$0xf]
    %v265 = vld [vmem:[#allocation8 + $0x18] sm:$0xf]
    %v266 = vld [vmem:[#allocation8 + $0x1c] sm:$0xf]
    %v267 = vld [vmem:[#allocation8 + $0x20] sm:$0xf]
    %v268 = vld [vmem:[#allocation8 + $0x24] sm:$0xf]
    %v269 = vld [vmem:[#allocation8 + $0x28] sm:$0xf]
    %v270 = vld [vmem:[#allocation8 + $0x2c] sm:$0xf]
    %v271 = vld [vmem:[#allocation8 + $0x30] sm:$0xf]
    %v272 = vld [vmem:[#allocation8 + $0x34] sm:$0xf]
    %v273 = vld [vmem:[#allocation8 + $0x38] sm:$0xf]
    %v274 = vld [vmem:[#allocation8 + $0x3c] sm:$0xf]
    %v275 = vld [vmem:[%s4] sm:$0x1]
    %v277 = vlaneseq
    %v278 = vshrl.u32 %v277, 7
    %v279 = vsub.s32 0, %v278
    %v280 = vrot.slane %v275, %v279
    %v298 = vunpack.c.l.b16 %v259
    %v299 = vunpack.c.l.b16 %v260
    %v300 = vunpack.c.l.b16 %v261
    %v301 = vunpack.c.l.b16 %v262
    %v302 = vunpack.c.l.b16 %v263
    %v303 = vunpack.c.l.b16 %v264
    %v304 = vunpack.c.l.b16 %v265
    %v305 = vunpack.c.l.b16 %v266
    %v306 = vunpack.c.l.b16 %v267
    %v307 = vunpack.c.l.b16 %v268
    %v308 = vunpack.c.l.b16 %v269
    %v309 = vunpack.c.l.b16 %v270
    %v310 = vunpack.c.l.b16 %v271
    %v311 = vunpack.c.l.b16 %v272
    %v312 = vunpack.c.l.b16 %v273
    %v313 = vunpack.c.l.b16 %v274
    %v314 = vpack.c.b16 %v299, %v298
    %v315 = vpack.c.b16 %v301, %v300
    %v316 = vpack.c.b16 %v303, %v302
    %v317 = vpack.c.b16 %v305, %v304
    %v318 = vpack.c.b16 %v307, %v306
    %v319 = vpack.c.b16 %v309, %v308
    %v320 = vpack.c.b16 %v311, %v310
    %v321 = vpack.c.b16 %v313, %v312
    %330 = vmatprep.subr.bf16.mxu0 0
    %331 = vmatpush1.bf16.msra.mxu0 %v314
    %332 = vmatprep.subr.bf16.mxu0 0
    %333 = vmatpush1.bf16.msra.mxu0 %v315
    %334 = vmatprep.subr.bf16.mxu0 0
    %335 = vmatpush1.bf16.msra.mxu0 %v316
    %336 = vmatprep.subr.bf16.mxu0 0
    %337 = vmatpush1.bf16.msra.mxu0 %v317
    %338 = vmatprep.subr.bf16.mxu0 0
    %339 = vmatpush1.bf16.msra.mxu0 %v318
    %340 = vmatprep.subr.bf16.mxu0 0
    %341 = vmatpush1.bf16.msra.mxu0 %v319
    %342 = vmatprep.subr.bf16.mxu0 0
    %343 = vmatpush1.bf16.msra.mxu0 %v320
    %344 = vmatprep.subr.bf16.mxu0 0
    %345 = vmatpush1.bf16.msra.mxu0 %v321
    %346 = vmatprep.subr.bf16.mxu0 0
    %347 = vmatpush1.bf16.msra.mxu0 0
    %348 = vmatprep.subr.bf16.mxu0 0
    %349 = vmatpush1.bf16.msra.mxu0 0
    %350 = vmatprep.subr.bf16.mxu0 0
    %351 = vmatpush1.bf16.msra.mxu0 0
    %352 = vmatprep.subr.bf16.mxu0 0
    %353 = vmatpush1.bf16.msra.mxu0 0
    %354 = vmatprep.subr.bf16.mxu0 0
    %355 = vmatpush1.bf16.msra.mxu0 0
    %356 = vmatprep.subr.bf16.mxu0 0
    %357 = vmatpush1.bf16.msra.mxu0 0
    %358 = vmatprep.subr.bf16.mxu0 0
    %359 = vmatpush1.bf16.msra.mxu0 0
    %360 = vmatprep.subr.bf16.mxu0 0
    %361 = vmatpush1.bf16.msra.mxu0 0
    %362 = vmatprep.mubr.bf16.mxu0 0
    %363 = vmatmul.mubr.bf16.gmra.mrb[0].mxu0 %v258
    %v364 = vpop.f32.mrb[0].mxu0
    %v365 = vadd.f32 %v280, %v364
    %v366 = vpop.f32.mrb[0].mxu0
    %v367 = vpop.f32.mrb[0].mxu0
    %v368 = vadd.f32 %v280, %v367
    %v369 = vpop.f32.mrb[0].mxu0
    %370 = vdwg.mxu0
    %v371 = vmul.f32 %v365, %v365
    %v372 = vmul.f32 %v368, %v368
    %v373 = vmul.f32 %v365, 0.5
    %v374 = vmul.f32 %v368, 0.5
    %v375 = vmul.f32 %v371, 0.044715
    %v376 = vmul.f32 %v372, 0.044715
    %v377 = vmul.f32 %v375, %v365
    %v378 = vmul.f32 %v376, %v368
    %v379 = vadd.f32 %v365, %v377
    %v380 = vadd.f32 %v368, %v378
    %v381 = vmul.f32 %v379, 0.7978846
    %v382 = vmul.f32 %v380, 0.7978846
    %v383 = vtanh.pop %v381
    %v384 = vtanh.pop %v382
    %v385 = vadd.f32 %v383, 1.0
    %v386 = vadd.f32 %v384, 1.0
    %v387 = vmul.f32 %v373, %v385
    %v388 = vmul.f32 %v374, %v386
    %v389 = vpack.c.bf16 %v388, %v387
    %v390 = vld [vmem:[#allocation10] sm:$0xf]
    %v391 = vld [vmem:[#allocation10 + $0x4] sm:$0xf]
    %v392 = vld [vmem:[#allocation10 + $0x8] sm:$0xf]
    %v393 = vld [vmem:[#allocation10 + $0xc] sm:$0xf]
    %v394 = vld [vmem:[#allocation10 + $0x10] sm:$0xf]
    %v395 = vld [vmem:[#allocation10 + $0x14] sm:$0xf]
    %v396 = vld [vmem:[#allocation10 + $0x18] sm:$0xf]
    %v397 = vld [vmem:[#allocation10 + $0x1c] sm:$0xf]
    %v398 = vld [vmem:[#allocation10 + $0x20] sm:$0xf]
    %v399 = vld [vmem:[#allocation10 + $0x24] sm:$0xf]
    %v400 = vld [vmem:[#allocation10 + $0x28] sm:$0xf]
    %v401 = vld [vmem:[#allocation10 + $0x2c] sm:$0xf]
    %v402 = vld [vmem:[#allocation10 + $0x30] sm:$0xf]
    %v403 = vld [vmem:[#allocation10 + $0x34] sm:$0xf]
    %v404 = vld [vmem:[#allocation10 + $0x38] sm:$0xf]
    %v405 = vld [vmem:[#allocation10 + $0x3c] sm:$0xf]
    %v406 = vld [vmem:[%s6] sm:$0x1]
    %v408 = vlaneseq
    %v409 = vshrl.u32 %v408, 7
    %v410 = vsub.s32 0, %v409
    %v411 = vrot.slane %v406, %v410
    %v429 = vunpack.c.l.b16 %v390
    %v430 = vunpack.c.l.b16 %v391
    %v431 = vunpack.c.l.b16 %v392
    %v432 = vunpack.c.l.b16 %v393
    %v433 = vunpack.c.l.b16 %v394
    %v434 = vunpack.c.l.b16 %v395
    %v435 = vunpack.c.l.b16 %v396
    %v436 = vunpack.c.l.b16 %v397
    %v437 = vunpack.c.l.b16 %v398
    %v438 = vunpack.c.l.b16 %v399
    %v439 = vunpack.c.l.b16 %v400
    %v440 = vunpack.c.l.b16 %v401
    %v441 = vunpack.c.l.b16 %v402
    %v442 = vunpack.c.l.b16 %v403
    %v443 = vunpack.c.l.b16 %v404
    %v444 = vunpack.c.l.b16 %v405
    %v445 = vpack.c.b16 %v430, %v429
    %v446 = vpack.c.b16 %v432, %v431
    %v447 = vpack.c.b16 %v434, %v433
    %v448 = vpack.c.b16 %v436, %v435
    %v449 = vpack.c.b16 %v438, %v437
    %v450 = vpack.c.b16 %v440, %v439
    %v451 = vpack.c.b16 %v442, %v441
    %v452 = vpack.c.b16 %v444, %v443
    %461 = vmatprep.subr.bf16.mxu0 0
    %462 = vmatpush1.bf16.msra.mxu0 %v445
    %463 = vmatprep.subr.bf16.mxu0 0
    %464 = vmatpush1.bf16.msra.mxu0 %v446
    %465 = vmatprep.subr.bf16.mxu0 0
    %466 = vmatpush1.bf16.msra.mxu0 %v447
    %467 = vmatprep.subr.bf16.mxu0 0
    %468 = vmatpush1.bf16.msra.mxu0 %v448
    %469 = vmatprep.subr.bf16.mxu0 0
    %470 = vmatpush1.bf16.msra.mxu0 %v449
    %471 = vmatprep.subr.bf16.mxu0 0
    %472 = vmatpush1.bf16.msra.mxu0 %v450
    %473 = vmatprep.subr.bf16.mxu0 0
    %474 = vmatpush1.bf16.msra.mxu0 %v451
    %475 = vmatprep.subr.bf16.mxu0 0
    %476 = vmatpush1.bf16.msra.mxu0 %v452
    %477 = vmatprep.subr.bf16.mxu0 0
    %478 = vmatpush1.bf16.msra.mxu0 0
    %479 = vmatprep.subr.bf16.mxu0 0
    %480 = vmatpush1.bf16.msra.mxu0 0
    %481 = vmatprep.subr.bf16.mxu0 0
    %482 = vmatpush1.bf16.msra.mxu0 0
    %483 = vmatprep.subr.bf16.mxu0 0
    %484 = vmatpush1.bf16.msra.mxu0 0
    %485 = vmatprep.subr.bf16.mxu0 0
    %486 = vmatpush1.bf16.msra.mxu0 0
    %487 = vmatprep.subr.bf16.mxu0 0
    %488 = vmatpush1.bf16.msra.mxu0 0
    %489 = vmatprep.subr.bf16.mxu0 0
    %490 = vmatpush1.bf16.msra.mxu0 0
    %491 = vmatprep.subr.bf16.mxu0 0
    %492 = vmatpush1.bf16.msra.mxu0 0
    %493 = vmatprep.mubr.bf16.mxu0 0
    %494 = vmatmul.mubr.bf16.gmra.mrb[0].mxu0 %v389
    %v495 = vpop.f32.mrb[0].mxu0
    %v496 = vadd.f32 %v411, %v495
    %v497 = vpop.f32.mrb[0].mxu0
    %v498 = vpop.f32.mrb[0].mxu0
    %v499 = vadd.f32 %v411, %v498
    %v500 = vpop.f32.mrb[0].mxu0
    %501 = vdwg.mxu0
    %502 = vst [vmem:[#allocation11] sm:$0xff] %v496
    %503 = vst [vmem:[#allocation11 + $0x8] sm:$0xff] %v499
    // Predicated region
    $region38: #{_forward_ids.1} parent=1 // pred_check
      _
    $region39: #{_forward_ids.1} parent=1 // pred_check_branch
      %505 = sbr.rel (0) target = $region41
    $region40: #{_forward_ids.1} parent=1 // pred_region
      %s507 = ssub.s32 256, 256
      %508 = vsyncadd [#allocation7], %s507
      %s509 = sshll.u32 [#allocation11], 4
      %s510 = int_to_ptr.vmem [resolvable:$true] %s509
      %515 = dma.vmem_to_hbm [thread:$0]  %s510, 256, %s7, [#allocation7], 128, 128, 8
    $region41: #{_forward_ids.1} parent=1 // pred_fallthru
      _
    // Predicated region
    $region42: #{_forward_ids.1} parent=1 // pred_check
      _
    $region43: #{_forward_ids.1} parent=1 // pred_check_branch
      %517 = sbr.rel (0) target = $region45
    $region44: #{_forward_ids.1} parent=1 // pred_region
      %518 = dma.done [#allocation7], 256
    $region45: #{_forward_ids.1} parent=1 // pred_fallthru
      _
    %519 = vsyncpa [#allocation6], 1
    %520 = vsyncpa [#allocation9], 1
    %521 = vsyncpa [#allocation7], 1

</llo_original>
